<compile_context>
chip_gen: v5e
topology: v5e:2x2
jax: 0.10.0
libtpu: 0.0.40
codegen_flags: <defaults>
</compile_context>

<pallas_src>
import jax
import jax.numpy as jnp
from jax import lax
from jax.experimental import pallas as pl
from jax.experimental.pallas import tpu as pltpu


_EPS = 1e-6     # F.normalize(eps=1e-6) semantics: x / max(||x||, eps)
_LANE = 128


def _static_pow(x, e):
    """x ** e for a static positive integer e, via repeated squaring (VALU only)."""
    result = None
    base = x
    while e > 0:
        if e & 1:
            result = base if result is None else result * base
        e >>= 1
        if e:
            base = base * base
    return result if result is not None else jnp.ones_like(x)


def _make_phong_kernel(shininess):
    """Build the kernel with shininess baked in at trace time."""
    shin = float(shininess)
    int_exp = int(shin) if (shin == int(shin) and 0 < shin <= 4096) else None

    def kernel(params_ref, cam_ref, pts_ref, nrm_ref, out_ref):
        """One (batch n, point-tile p) step.

        params_ref : SMEM f32[12] = [light_loc(3), ambient(3), diffuse(3), specular(3)]
        cam_ref    : SMEM f32[3*N] flattened camera positions
        pts_ref    : VMEM f32[3, TR, 128] point coords (x/y/z planes)
        nrm_ref    : VMEM f32[3, TR, 128] normals     (x/y/z planes)
        out_ref    : VMEM f32[3, TR, 128] output colors (r/g/b planes)
        """
        n = pl.program_id(0)

        lx, ly, lz = params_ref[0], params_ref[1], params_ref[2]
        amb = (params_ref[3], params_ref[4], params_ref[5])
        dif = (params_ref[6], params_ref[7], params_ref[8])
        spc = (params_ref[9], params_ref[10], params_ref[11])

        cx = cam_ref[3 * n + 0]
        cy = cam_ref[3 * n + 1]
        cz = cam_ref[3 * n + 2]

        # Dense (TR, 128) slabs per channel: full vreg occupancy.
        px, py, pz = pts_ref[0], pts_ref[1], pts_ref[2]
        nx, ny, nz = nrm_ref[0], nrm_ref[1], nrm_ref[2]

        def inv_norm(x, y, z):
            # 1 / max(sqrt(sq), eps) == rsqrt(max(sq, eps^2)) -> single EUP op.
            sq = x * x + y * y + z * z
            return lax.rsqrt(jnp.maximum(sq, _EPS * _EPS))

        # Normalized surface normals.
        inv_n = inv_norm(nx, ny, nz)
        nhx, nhy, nhz = nx * inv_n, ny * inv_n, nz * inv_n

        # Light direction (point light): normalize(location - points).
        ldx, ldy, ldz = lx - px, ly - py, lz - pz
        inv_l = inv_norm(ldx, ldy, ldz)
        dx, dy, dz = ldx * inv_l, ldy * inv_l, ldz * inv_l

        # Diffuse term.
        cos_angle = nhx * dx + nhy * dy + nhz * dz
        angle = jnp.maximum(cos_angle, 0.0)
        mask = (cos_angle > 0.0).astype(jnp.float32)

        # View direction.
        vdx, vdy, vdz = cx - px, cy - py, cz - pz
        inv_v = inv_norm(vdx, vdy, vdz)
        vx, vy, vz = vdx * inv_v, vdy * inv_v, vdz * inv_v

        # Reflection of the light direction about the normal.
        two_cos = 2.0 * cos_angle
        rx = two_cos * nhx - dx
        ry = two_cos * nhy - dy
        rz = two_cos * nhz - dz

        alpha = jnp.maximum(vx * rx + vy * ry + vz * rz, 0.0) * mask
        if int_exp is not None:
            spec = _static_pow(alpha, int_exp)          # VALU repeated squaring
        else:
            spec = jnp.power(alpha, jnp.float32(shin))  # EUP exp/log fallback

        # Full, unmasked (TR, 128) stores per channel.
        out_ref[0] = amb[0] + dif[0] * angle + spc[0] * spec
        out_ref[1] = amb[1] + dif[1] * angle + spc[1] * spec
        out_ref[2] = amb[2] + dif[2] * angle + spc[2] * spec

    return kernel


def _pick_block_rows(num_rows, target_rows):
    """Largest block row count <= target that tiles num_rows and satisfies the
    (8, 128) constraint (multiple of 8, or the whole axis)."""
    if num_rows <= target_rows:
        return num_rows
    t = (target_rows // 8) * 8
    while t >= 8:
        if num_rows % t == 0:
            return t
        t -= 8
    return num_rows  # no clean multiple-of-8 divisor: take the full axis


def soft_phong_shader_planar(points_cp, normals_cp, camera_position,
                             light_location, light_ambient, light_diffuse, light_specular,
                             mat_ambient, mat_diffuse, mat_specular, shininess,
                             *, tile_p=32768):
    """Channel-planar fast path.

    points_cp, normals_cp: (N, 3, P) float32; camera_position: (N, 3).
    Returns colors in channel-planar layout (N, 3, P).
    """
    N, C, P = points_cp.shape
    assert C == 3, "expected channel-planar (N, 3, P) input"
    assert P % _LANE == 0, "P must be a multiple of 128 lanes"
    R = P // _LANE

    # Pick a large, sublane-dense tile; keep >= 2 point blocks when N == 1 so
    # both v7x TensorCores get work (batch axis already parallel otherwise).
    target_rows = max(1, tile_p // _LANE)
    if N < 2 and R > 1:
        target_rows = min(target_rows, max(8, R // 2))
    TR = _pick_block_rows(R, target_rows)

    pts = points_cp.reshape(N, 3, R, _LANE).astype(jnp.float32)
    nrm = normals_cp.reshape(N, 3, R, _LANE).astype(jnp.float32)
    cam = camera_position.reshape(-1).astype(jnp.float32)        # 1-D SMEM, no 2-D padding

    # Per-channel constant color factors (parameter setup, negligible cost).
    amb = (mat_ambient * light_ambient).astype(jnp.float32)
    dif = (mat_diffuse * light_diffuse).astype(jnp.float32)
    spc = (mat_specular * light_specular).astype(jnp.float32)
    params = jnp.concatenate(
        [light_location.astype(jnp.float32), amb, dif, spc])     # f32[12]

    block = (None, 3, TR, _LANE)
    block_bytes = 3 * TR * _LANE * 4
    # pts + nrm + out, double-buffered, plus 2x headroom; never below 16 MiB
    # (the smallest per-generation default scoped-VMEM limit).
    vmem_limit = int(max(2 * (3 * 2 * block_bytes), 16 * 1024 * 1024))

    grid = (N, R // TR)
    out = pl.pallas_call(
        _make_phong_kernel(shininess),
        out_shape=jax.ShapeDtypeStruct((N, 3, R, _LANE), jnp.float32),
        grid=grid,
        in_specs=[
            pl.BlockSpec(memory_space=pltpu.MemorySpace.SMEM),        # params
            pl.BlockSpec(memory_space=pltpu.MemorySpace.SMEM),        # camera (flat)
            pl.BlockSpec(block, lambda n, p: (n, 0, p, 0)),           # points
            pl.BlockSpec(block, lambda n, p: (n, 0, p, 0)),           # normals
        ],
        out_specs=pl.BlockSpec(block, lambda n, p: (n, 0, p, 0)),
        compiler_params=pltpu.CompilerParams(
            dimension_semantics=("parallel", "parallel"),
            vmem_limit_bytes=vmem_limit),
    )(params, cam, pts, nrm)

    return out.reshape(N, 3, P)


def soft_phong_shader(points, normals, camera_position,
                      light_location, light_ambient, light_diffuse, light_specular,
                      mat_ambient, mat_diffuse, mat_specular, shininess,
                      *, tile_p=32768):
    """PyTorch-convention entry point: points, normals (N, P, 3); returns (N, P, 3)."""
    # TODO(synk): these minor-dim-3 HBM transposes roughly triple end-to-end
    # memory traffic for this bandwidth-bound shader; callers that can provide
    # channel-planar (N, 3, P) data should use soft_phong_shader_planar directly.
    pts_cp = jnp.transpose(points, (0, 2, 1))
    nrm_cp = jnp.transpose(normals, (0, 2, 1))
    out_cp = soft_phong_shader_planar(
        pts_cp, nrm_cp, camera_position,
        light_location, light_ambient, light_diffuse, light_specular,
        mat_ambient, mat_diffuse, mat_specular, shininess, tile_p=tile_p)
    return jnp.transpose(out_cp, (0, 2, 1))


def _reference(points, normals, camera_position,
               light_location, light_ambient, light_diffuse, light_specular,
               mat_ambient, mat_diffuse, mat_specular, shininess):
    """Pure-JAX reference of the PyTorch forward semantics."""
    def _norm(x):
        n = jnp.linalg.norm(x, axis=-1, keepdims=True)
        return x / jnp.maximum(n, _EPS)

    n_hat = _norm(normals)
    direction = _norm(light_location - points)
    cos_angle = jnp.sum(n_hat * direction, axis=-1)
    angle = jnp.maximum(cos_angle, 0.0)
    mask = (cos_angle > 0.0).astype(jnp.float32)
    view_dir = _norm(camera_position[:, None, :] - points)
    reflect = -direction + 2.0 * cos_angle[..., None] * n_hat
    alpha = jnp.maximum(jnp.sum(view_dir * reflect, axis=-1), 0.0) * mask
    spec = jnp.power(alpha, shininess)

    amb = mat_ambient * light_ambient
    dif = mat_diffuse * light_diffuse
    spc = mat_specular * light_specular
    return amb[None, None, :] + dif[None, None, :] * angle[..., None] \
        + spc[None, None, :] * spec[..., None]


if __name__ == "__main__":
    key = jax.random.PRNGKey(0)
    k_pts, k_nrm, k_cam = jax.random.split(key, 3)

    N, P = 2, 1024  # small shapes; P multiple of 128 lanes
    points = jax.random.normal(k_pts, (N, P, 3), dtype=jnp.float32)
    normals = jax.random.normal(k_nrm, (N, P, 3), dtype=jnp.float32)
    camera_position = jax.random.normal(k_cam, (N, 3), dtype=jnp.float32) * 3.0

    # Deterministic PointLight / Materials defaults (pytorch3d conventions).
    light_location = jnp.array([0.0, 1.0, 0.0], jnp.float32)
    light_ambient = jnp.array([0.5, 0.5, 0.5], jnp.float32)
    light_diffuse = jnp.array([0.3, 0.3, 0.3], jnp.float32)
    light_specular = jnp.array([0.2, 0.2, 0.2], jnp.float32)
    mat_ambient = jnp.array([1.0, 1.0, 1.0], jnp.float32)
    mat_diffuse = jnp.array([1.0, 1.0, 1.0], jnp.float32)
    mat_specular = jnp.array([1.0, 1.0, 1.0], jnp.float32)
    shininess = 64.0

    colors = soft_phong_shader(
        points, normals, camera_position,
        light_location, light_ambient, light_diffuse, light_specular,
        mat_ambient, mat_diffuse, mat_specular, shininess)
    colors = jax.block_until_ready(colors)

    ref = _reference(
        points, normals, camera_position,
        light_location, light_ambient, light_diffuse, light_specular,
        mat_ambient, mat_diffuse, mat_specular, shininess)
    ref = jax.block_until_ready(ref)

    assert colors.shape == (N, P, 3)
    assert jnp.allclose(colors, ref, rtol=2e-3, atol=2e-3), \
        f"max abs err = {jnp.max(jnp.abs(colors - ref))}"

    # Also exercise the transpose-free channel-planar fast path.
    colors_cp = soft_phong_shader_planar(
        jnp.transpose(points, (0, 2, 1)), jnp.transpose(normals, (0, 2, 1)),
        camera_position,
        light_location, light_ambient, light_diffuse, light_specular,
        mat_ambient, mat_diffuse, mat_specular, shininess)
    colors_cp = jax.block_until_ready(colors_cp)
    assert jnp.allclose(jnp.transpose(colors_cp, (0, 2, 1)), ref,
                        rtol=2e-3, atol=2e-3)

    print("KERNEL_OK")
</pallas_src>

<mosaic_0001>
module attributes {stable_mosaic.version = 11 : i64} {
  func.func @kernel(%arg0: i32, %arg1: i32, %arg2: memref<12xf32, #tpu.memory_space<smem>>, %arg3: memref<6xf32, #tpu.memory_space<smem>>, %arg4: memref<1x3x8x128xf32, #tpu.memory_space<vmem>>, %arg5: memref<1x3x8x128xf32, #tpu.memory_space<vmem>>, %arg6: memref<1x3x8x128xf32, #tpu.memory_space<vmem>>) attributes {dimension_semantics = [#tpu.dimension_semantics<parallel>, #tpu.dimension_semantics<parallel>], iteration_bounds = array<i64: 2, 1>, scalar_prefetch = 0 : i64, scratch_operands = 0 : i64, tpu.core_type = #tpu.core_type<tc>, window_params = [{transform_indices = @transform_0, window_bounds = array<i64: 12>}, {transform_indices = @transform_1, window_bounds = array<i64: 6>}, {transform_indices = @transform_2, window_bounds = array<i64: 1, 3, 8, 128>}, {transform_indices = @transform_3, window_bounds = array<i64: 1, 3, 8, 128>}, {transform_indices = @transform_4, window_bounds = array<i64: 1, 3, 8, 128>}]} {
    %c0 = arith.constant 0 : index
    %0 = memref.load %arg2[%c0] : memref<12xf32, #tpu.memory_space<smem>>
    %c1 = arith.constant 1 : index
    %1 = memref.load %arg2[%c1] : memref<12xf32, #tpu.memory_space<smem>>
    %c2 = arith.constant 2 : index
    %2 = memref.load %arg2[%c2] : memref<12xf32, #tpu.memory_space<smem>>
    %c3 = arith.constant 3 : index
    %3 = memref.load %arg2[%c3] : memref<12xf32, #tpu.memory_space<smem>>
    %c4 = arith.constant 4 : index
    %4 = memref.load %arg2[%c4] : memref<12xf32, #tpu.memory_space<smem>>
    %c5 = arith.constant 5 : index
    %5 = memref.load %arg2[%c5] : memref<12xf32, #tpu.memory_space<smem>>
    %c6 = arith.constant 6 : index
    %6 = memref.load %arg2[%c6] : memref<12xf32, #tpu.memory_space<smem>>
    %c7 = arith.constant 7 : index
    %7 = memref.load %arg2[%c7] : memref<12xf32, #tpu.memory_space<smem>>
    %c8 = arith.constant 8 : index
    %8 = memref.load %arg2[%c8] : memref<12xf32, #tpu.memory_space<smem>>
    %c9 = arith.constant 9 : index
    %9 = memref.load %arg2[%c9] : memref<12xf32, #tpu.memory_space<smem>>
    %c10 = arith.constant 10 : index
    %10 = memref.load %arg2[%c10] : memref<12xf32, #tpu.memory_space<smem>>
    %c11 = arith.constant 11 : index
    %11 = memref.load %arg2[%c11] : memref<12xf32, #tpu.memory_space<smem>>
    %c3_i32 = arith.constant 3 : i32
    %12 = arith.muli %c3_i32, %arg0 : i32
    %c0_i32 = arith.constant 0 : i32
    %13 = arith.addi %12, %c0_i32 : i32
    %14 = arith.index_cast %13 : i32 to index
    %15 = memref.load %arg3[%14] : memref<6xf32, #tpu.memory_space<smem>>
    %c3_i32_0 = arith.constant 3 : i32
    %16 = arith.muli %c3_i32_0, %arg0 : i32
    %c1_i32 = arith.constant 1 : i32
    %17 = arith.addi %16, %c1_i32 : i32
    %18 = arith.index_cast %17 : i32 to index
    %19 = memref.load %arg3[%18] : memref<6xf32, #tpu.memory_space<smem>>
    %c3_i32_1 = arith.constant 3 : i32
    %20 = arith.muli %c3_i32_1, %arg0 : i32
    %c2_i32 = arith.constant 2 : i32
    %21 = arith.addi %20, %c2_i32 : i32
    %22 = arith.index_cast %21 : i32 to index
    %23 = memref.load %arg3[%22] : memref<6xf32, #tpu.memory_space<smem>>
    %c0_2 = arith.constant 0 : index
    %c0_3 = arith.constant 0 : index
    %c0_4 = arith.constant 0 : index
    %c0_5 = arith.constant 0 : index
    %24 = vector.load %arg4[%c0_2, %c0_3, %c0_4, %c0_5] : memref<1x3x8x128xf32, #tpu.memory_space<vmem>>, vector<1x1x8x128xf32>
    %25 = vector.shape_cast %24 : vector<1x1x8x128xf32> to vector<8x128xf32>
    %c0_6 = arith.constant 0 : index
    %c1_7 = arith.constant 1 : index
    %c0_8 = arith.constant 0 : index
    %c0_9 = arith.constant 0 : index
    %26 = vector.load %arg4[%c0_6, %c1_7, %c0_8, %c0_9] : memref<1x3x8x128xf32, #tpu.memory_space<vmem>>, vector<1x1x8x128xf32>
    %27 = vector.shape_cast %26 : vector<1x1x8x128xf32> to vector<8x128xf32>
    %c0_10 = arith.constant 0 : index
    %c2_11 = arith.constant 2 : index
    %c0_12 = arith.constant 0 : index
    %c0_13 = arith.constant 0 : index
    %28 = vector.load %arg4[%c0_10, %c2_11, %c0_12, %c0_13] : memref<1x3x8x128xf32, #tpu.memory_space<vmem>>, vector<1x1x8x128xf32>
    %29 = vector.shape_cast %28 : vector<1x1x8x128xf32> to vector<8x128xf32>
    %c0_14 = arith.constant 0 : index
    %c0_15 = arith.constant 0 : index
    %c0_16 = arith.constant 0 : index
    %c0_17 = arith.constant 0 : index
    %30 = vector.load %arg5[%c0_14, %c0_15, %c0_16, %c0_17] : memref<1x3x8x128xf32, #tpu.memory_space<vmem>>, vector<1x1x8x128xf32>
    %31 = vector.shape_cast %30 : vector<1x1x8x128xf32> to vector<8x128xf32>
    %c0_18 = arith.constant 0 : index
    %c1_19 = arith.constant 1 : index
    %c0_20 = arith.constant 0 : index
    %c0_21 = arith.constant 0 : index
    %32 = vector.load %arg5[%c0_18, %c1_19, %c0_20, %c0_21] : memref<1x3x8x128xf32, #tpu.memory_space<vmem>>, vector<1x1x8x128xf32>
    %33 = vector.shape_cast %32 : vector<1x1x8x128xf32> to vector<8x128xf32>
    %c0_22 = arith.constant 0 : index
    %c2_23 = arith.constant 2 : index
    %c0_24 = arith.constant 0 : index
    %c0_25 = arith.constant 0 : index
    %34 = vector.load %arg5[%c0_22, %c2_23, %c0_24, %c0_25] : memref<1x3x8x128xf32, #tpu.memory_space<vmem>>, vector<1x1x8x128xf32>
    %35 = vector.shape_cast %34 : vector<1x1x8x128xf32> to vector<8x128xf32>
    %36 = arith.mulf %31, %31 : vector<8x128xf32>
    %37 = arith.mulf %33, %33 : vector<8x128xf32>
    %38 = arith.addf %36, %37 : vector<8x128xf32>
    %39 = arith.mulf %35, %35 : vector<8x128xf32>
    %40 = arith.addf %38, %39 : vector<8x128xf32>
    %cst = arith.constant 9.99999996E-13 : f32
    %41 = vector.broadcast %cst : f32 to vector<8x128xf32>
    %42 = arith.maximumf %40, %41 : vector<8x128xf32>
    %43 = math.rsqrt %42 : vector<8x128xf32>
    %44 = arith.mulf %31, %43 : vector<8x128xf32>
    %45 = arith.mulf %33, %43 : vector<8x128xf32>
    %46 = arith.mulf %35, %43 : vector<8x128xf32>
    %47 = vector.broadcast %0 : f32 to vector<8x128xf32>
    %48 = arith.subf %47, %25 : vector<8x128xf32>
    %49 = vector.broadcast %1 : f32 to vector<8x128xf32>
    %50 = arith.subf %49, %27 : vector<8x128xf32>
    %51 = vector.broadcast %2 : f32 to vector<8x128xf32>
    %52 = arith.subf %51, %29 : vector<8x128xf32>
    %53 = arith.mulf %48, %48 : vector<8x128xf32>
    %54 = arith.mulf %50, %50 : vector<8x128xf32>
    %55 = arith.addf %53, %54 : vector<8x128xf32>
    %56 = arith.mulf %52, %52 : vector<8x128xf32>
    %57 = arith.addf %55, %56 : vector<8x128xf32>
    %cst_26 = arith.constant 9.99999996E-13 : f32
    %58 = vector.broadcast %cst_26 : f32 to vector<8x128xf32>
    %59 = arith.maximumf %57, %58 : vector<8x128xf32>
    %60 = math.rsqrt %59 : vector<8x128xf32>
    %61 = arith.mulf %48, %60 : vector<8x128xf32>
    %62 = arith.mulf %50, %60 : vector<8x128xf32>
    %63 = arith.mulf %52, %60 : vector<8x128xf32>
    %64 = arith.mulf %44, %61 : vector<8x128xf32>
    %65 = arith.mulf %45, %62 : vector<8x128xf32>
    %66 = arith.addf %64, %65 : vector<8x128xf32>
    %67 = arith.mulf %46, %63 : vector<8x128xf32>
    %68 = arith.addf %66, %67 : vector<8x128xf32>
    %cst_27 = arith.constant 0.000000e+00 : f32
    %69 = vector.broadcast %cst_27 : f32 to vector<8x128xf32>
    %70 = arith.maximumf %68, %69 : vector<8x128xf32>
    %cst_28 = arith.constant 0.000000e+00 : f32
    %71 = vector.broadcast %cst_28 : f32 to vector<8x128xf32>
    %72 = arith.cmpf ogt, %68, %71 : vector<8x128xf32>
    %73 = arith.extui %72 : vector<8x128xi1> to vector<8x128xi32>
    %74 = arith.sitofp %73 : vector<8x128xi32> to vector<8x128xf32>
    %75 = vector.broadcast %15 : f32 to vector<8x128xf32>
    %76 = arith.subf %75, %25 : vector<8x128xf32>
    %77 = vector.broadcast %19 : f32 to vector<8x128xf32>
    %78 = arith.subf %77, %27 : vector<8x128xf32>
    %79 = vector.broadcast %23 : f32 to vector<8x128xf32>
    %80 = arith.subf %79, %29 : vector<8x128xf32>
    %81 = arith.mulf %76, %76 : vector<8x128xf32>
    %82 = arith.mulf %78, %78 : vector<8x128xf32>
    %83 = arith.addf %81, %82 : vector<8x128xf32>
    %84 = arith.mulf %80, %80 : vector<8x128xf32>
    %85 = arith.addf %83, %84 : vector<8x128xf32>
    %cst_29 = arith.constant 9.99999996E-13 : f32
    %86 = vector.broadcast %cst_29 : f32 to vector<8x128xf32>
    %87 = arith.maximumf %85, %86 : vector<8x128xf32>
    %88 = math.rsqrt %87 : vector<8x128xf32>
    %89 = arith.mulf %76, %88 : vector<8x128xf32>
    %90 = arith.mulf %78, %88 : vector<8x128xf32>
    %91 = arith.mulf %80, %88 : vector<8x128xf32>
    %cst_30 = arith.constant 2.000000e+00 : f32
    %92 = vector.broadcast %cst_30 : f32 to vector<8x128xf32>
    %93 = arith.mulf %92, %68 : vector<8x128xf32>
    %94 = arith.mulf %93, %44 : vector<8x128xf32>
    %95 = arith.subf %94, %61 : vector<8x128xf32>
    %96 = arith.mulf %93, %45 : vector<8x128xf32>
    %97 = arith.subf %96, %62 : vector<8x128xf32>
    %98 = arith.mulf %93, %46 : vector<8x128xf32>
    %99 = arith.subf %98, %63 : vector<8x128xf32>
    %100 = arith.mulf %89, %95 : vector<8x128xf32>
    %101 = arith.mulf %90, %97 : vector<8x128xf32>
    %102 = arith.addf %100, %101 : vector<8x128xf32>
    %103 = arith.mulf %91, %99 : vector<8x128xf32>
    %104 = arith.addf %102, %103 : vector<8x128xf32>
    %cst_31 = arith.constant 0.000000e+00 : f32
    %105 = vector.broadcast %cst_31 : f32 to vector<8x128xf32>
    %106 = arith.maximumf %104, %105 : vector<8x128xf32>
    %107 = arith.mulf %106, %74 : vector<8x128xf32>
    %108 = arith.mulf %107, %107 : vector<8x128xf32>
    %109 = arith.mulf %108, %108 : vector<8x128xf32>
    %110 = arith.mulf %109, %109 : vector<8x128xf32>
    %111 = arith.mulf %110, %110 : vector<8x128xf32>
    %112 = arith.mulf %111, %111 : vector<8x128xf32>
    %113 = arith.mulf %112, %112 : vector<8x128xf32>
    %114 = vector.broadcast %6 : f32 to vector<8x128xf32>
    %115 = arith.mulf %114, %70 : vector<8x128xf32>
    %116 = vector.broadcast %3 : f32 to vector<8x128xf32>
    %117 = arith.addf %116, %115 : vector<8x128xf32>
    %118 = vector.broadcast %9 : f32 to vector<8x128xf32>
    %119 = arith.mulf %118, %113 : vector<8x128xf32>
    %120 = arith.addf %117, %119 : vector<8x128xf32>
    %c0_32 = arith.constant 0 : index
    %c0_33 = arith.constant 0 : index
    %c0_34 = arith.constant 0 : index
    %c0_35 = arith.constant 0 : index
    %121 = vector.load %arg6[%c0_32, %c0_33, %c0_34, %c0_35] : memref<1x3x8x128xf32, #tpu.memory_space<vmem>>, vector<1x1x8x128xf32>
    %122 = vector.shape_cast %121 : vector<1x1x8x128xf32> to vector<8x128xf32>
    %123 = vector.shape_cast %120 : vector<8x128xf32> to vector<1x1x8x128xf32>
    tpu.vector_store %arg6[%c0_32, %c0_33, %c0_34, %c0_35], %123 {strides = array<i32>} : memref<1x3x8x128xf32, #tpu.memory_space<vmem>>, vector<1x1x8x128xf32>,
    %124 = vector.broadcast %7 : f32 to vector<8x128xf32>
    %125 = arith.mulf %124, %70 : vector<8x128xf32>
    %126 = vector.broadcast %4 : f32 to vector<8x128xf32>
    %127 = arith.addf %126, %125 : vector<8x128xf32>
    %128 = vector.broadcast %10 : f32 to vector<8x128xf32>
    %129 = arith.mulf %128, %113 : vector<8x128xf32>
    %130 = arith.addf %127, %129 : vector<8x128xf32>
    %c0_36 = arith.constant 0 : index
    %c1_37 = arith.constant 1 : index
    %c0_38 = arith.constant 0 : index
    %c0_39 = arith.constant 0 : index
    %131 = vector.load %arg6[%c0_36, %c1_37, %c0_38, %c0_39] : memref<1x3x8x128xf32, #tpu.memory_space<vmem>>, vector<1x1x8x128xf32>
    %132 = vector.shape_cast %131 : vector<1x1x8x128xf32> to vector<8x128xf32>
    %133 = vector.shape_cast %130 : vector<8x128xf32> to vector<1x1x8x128xf32>
    tpu.vector_store %arg6[%c0_36, %c1_37, %c0_38, %c0_39], %133 {strides = array<i32>} : memref<1x3x8x128xf32, #tpu.memory_space<vmem>>, vector<1x1x8x128xf32>,
    %134 = vector.broadcast %8 : f32 to vector<8x128xf32>
    %135 = arith.mulf %134, %70 : vector<8x128xf32>
    %136 = vector.broadcast %5 : f32 to vector<8x128xf32>
    %137 = arith.addf %136, %135 : vector<8x128xf32>
    %138 = vector.broadcast %11 : f32 to vector<8x128xf32>
    %139 = arith.mulf %138, %113 : vector<8x128xf32>
    %140 = arith.addf %137, %139 : vector<8x128xf32>
    %c0_40 = arith.constant 0 : index
    %c2_41 = arith.constant 2 : index
    %c0_42 = arith.constant 0 : index
    %c0_43 = arith.constant 0 : index
    %141 = vector.load %arg6[%c0_40, %c2_41, %c0_42, %c0_43] : memref<1x3x8x128xf32, #tpu.memory_space<vmem>>, vector<1x1x8x128xf32>
    %142 = vector.shape_cast %141 : vector<1x1x8x128xf32> to vector<8x128xf32>
    %143 = vector.shape_cast %140 : vector<8x128xf32> to vector<1x1x8x128xf32>
    tpu.vector_store %arg6[%c0_40, %c2_41, %c0_42, %c0_43], %143 {strides = array<i32>} : memref<1x3x8x128xf32, #tpu.memory_space<vmem>>, vector<1x1x8x128xf32>,
    return
  }
  func.func @transform_0(%arg0: i32, %arg1: i32) -> i32 {
    %c0_i32 = arith.constant 0 : i32
    %c0_i32_0 = arith.constant 0 : i32
    return %c0_i32 : i32
  }
  func.func @transform_1(%arg0: i32, %arg1: i32) -> i32 {
    %c0_i32 = arith.constant 0 : i32
    %c0_i32_0 = arith.constant 0 : i32
    return %c0_i32 : i32
  }
  func.func @transform_2(%arg0: i32, %arg1: i32) -> (i32, i32, i32, i32) {
    %c0_i32 = arith.constant 0 : i32
    %c0_i32_0 = arith.constant 0 : i32
    %c0_i32_1 = arith.constant 0 : i32
    return %arg0, %c0_i32, %arg1, %c0_i32_0 : i32, i32, i32, i32
  }
  func.func @transform_3(%arg0: i32, %arg1: i32) -> (i32, i32, i32, i32) {
    %c0_i32 = arith.constant 0 : i32
    %c0_i32_0 = arith.constant 0 : i32
    %c0_i32_1 = arith.constant 0 : i32
    return %arg0, %c0_i32, %arg1, %c0_i32_0 : i32, i32, i32, i32
  }
  func.func @transform_4(%arg0: i32, %arg1: i32) -> (i32, i32, i32, i32) {
    %c0_i32 = arith.constant 0 : i32
    %c0_i32_0 = arith.constant 0 : i32
    %c0_i32_1 = arith.constant 0 : i32
    return %arg0, %c0_i32, %arg1, %c0_i32_0 : i32, i32, i32, i32
  }
}

</mosaic_0001>

<llo_original>
// kernel: tpu_custom_call.1
$region0: #{tpu_custom_call.1}
  #allocation0 [shape = 'u32[]', space=smem, size = 0x4, offset = 0x4, fixed_abs, tag = 'smem constant byte address 0x4 - core index']
  #allocation1 [shape = 'u32[72,128]{1,0:T(1,128)}', space=vmem, size = 0x9000, scoped, tag = 'internal scratch']
  %s0 = inlined_call_operand.hbm [shape: f32[12], index: 0, kind: input, shape index: {}]
  %s1 = inlined_call_operand.hbm [shape: f32[6], index: 1, kind: input, shape index: {}]
  %s2 = inlined_call_operand.hbm [shape: f32[2,3,8,128], index: 2, kind: input, shape index: {}]
  %s3 = inlined_call_operand.hbm [shape: f32[2,3,8,128], index: 3, kind: input, shape index: {}]
  %s4 = inlined_call_operand.hbm [shape: f32[2,3,8,128], index: 4, kind: output, shape index: {}]
  %s5 = sld [smem:[#allocation0]]
  $region65: #{tpu_custom_call.1} parent=0
    _
  %s7 = ssub.s32 1, %s5
  %s8 = scalar_select 0, %s7, %s5
  $region1: #{tpu_custom_call.1} parent=0
    #allocation2 [shape = 'u8[512]{0}', space=smem, size = 0x200, scoped, tag = 'input window, operand 0, single buffered']
    #allocation3 [shape = 's32[2]{0}', space=sflag, size = 0x8, scoped, tag = 'scoped memory for tpu_custom_call.1']
    #allocation4 [shape = 's32[2]{0}', space=sflag, size = 0x8, scoped, tag = 'scoped memory for tpu_custom_call.1']
    #allocation5 [shape = 's32[2]{0}', space=sflag, size = 0x8, scoped, tag = 'scoped memory for tpu_custom_call.1']
    #allocation6 [shape = 'u8[512]{0}', space=smem, size = 0x200, scoped, tag = 'input window, operand 1, single buffered']
    #allocation7 [shape = 's32[1]{0}', space=sflag, size = 0x4, scoped, tag = 'scoped memory for tpu_custom_call.1']
    #allocation8 [shape = 'u8[24576]{0}', space=vmem, size = 0x6000, scoped, tag = 'input window, operand 2']
    #allocation9 [shape = 'u8[24576]{0}', space=vmem, size = 0x6000, scoped, tag = 'input window, operand 3']
    #allocation10 [shape = 's32[2]{0}', space=sflag, size = 0x8, scoped, tag = 'scoped memory for tpu_custom_call.1']
    #allocation11 [shape = 'u8[24576]{0}', space=vmem, size = 0x6000, scoped, tag = 'output window, operand 0']
    %9 = vsyncpa [#allocation5], 0
    %10 = vsyncpa [#allocation7], 0
    %11 = vsyncpa [#allocation3], 0
    %s12 = scalar_lea.sflag [#allocation3], 1
    %13 = vsyncpa %s12, 0
    %14 = vsyncpa [#allocation10], 0
    %s15 = scalar_lea.sflag [#allocation10], 1
    %16 = vsyncpa %s15, 0
    %17 = vsyncpa [#allocation4], 0
    %s18 = scalar_lea.sflag [#allocation4], 1
    %19 = vsyncpa %s18, 0
    loop: start=0, step=1, limit=4
    $region2: #{tpu_custom_call.1} parent=1 // loop_pre_header
      _
    $region3: #{tpu_custom_call.1} parent=1 // loop_header
      %s21 = sphi 0, %s25
      %p22 = scmp.ge.s32.totalorder %s21, 4
      %s28 = sphi 0, %s40
      %s29 = sphi 0, %s36
      %s30 = sphi 0, %s28
      %s31 = sphi 0, %s29
      %s32 = sphi 0, %s30
      %s33 = sphi 0, %s31
      %s41 = sphi 0, %s41
      %s43 = sphi 0, %s41
      %s44 = sphi 0, %s43
      %s58 = sphi 0, %s44
      %s62 = sphi 0, %s62
      %s64 = sphi 0, %s62
      %s65 = sphi 0, %s64
      %s79 = sphi 0, %s65
      %s87 = sphi 0, %s89
      %s90 = sphi 0, %s87
      %s91 = sphi 0, %s90
      %s107 = sphi 0, %s91
      %s115 = sphi 0, %s117
      %s118 = sphi 0, %s115
      %s119 = sphi 0, %s118
      %s135 = sphi 0, %s119
      %s143 = sphi 0, %s145
      %s146 = sphi 0, %s143
      %s147 = sphi 0, %s146
      %s163 = sphi 0, %s147
    $region4: #{tpu_custom_call.1} parent=1 // loop_header_branch
      %24 = sbr.rel (%p22) target = $region8
    $region5: #{tpu_custom_call.1} parent=1 // loop_body
      %s26 = ssub.s32 %s21, 1
      %s27 = ssub.s32 %s21, 2
      %s34 = sadd.s32 1, %s29
      %p35 = scmp.ge.s32.totalorder %s34, 1
      %s36 = scalar_select %p35, 0, %s34
      %s37 = sadd.s32 1, %s28
      %s38 = scalar_select %p35, %s37, %s28
      %p39 = scmp.ge.s32.totalorder %s38, 2
      %s40 = scalar_select %p39, 0, %s38
      %s42 = sadd.s32 %s41, 1
      %p45 = scmp.eq.s32.totalorder %s21, 1
      %p46 = scmp.ne.s32.totalorder %s41, %s43
      %p47 = scmp.eq.s32.totalorder %s21, 0
      %p48 = por %p46, %p47
      %p49 = scmp.ne.s32.totalorder %s41, %s43
      %p50 = scmp.eq.s32.totalorder %s26, 1
      %p51 = por %p49, %p50
      %p52 = scmp.ne.s32.totalorder %s43, %s44
      %p53 = scmp.eq.s32.totalorder %s26, 0
      %p54 = por %p52, %p53
      %p55 = scmp.ne.s32.totalorder %s43, %s44
      %p56 = scmp.eq.s32.totalorder %s27, 1
      %p57 = por %p55, %p56
      %p59 = scmp.ne.s32.totalorder %s44, %s58
      %p60 = scmp.eq.s32.totalorder %s27, 0
      %p61 = por %p59, %p60
      %s63 = sadd.s32 %s62, 1
      %p66 = scmp.eq.s32.totalorder %s21, 1
      %p67 = scmp.ne.s32.totalorder %s62, %s64
      %p68 = scmp.eq.s32.totalorder %s21, 0
      %p69 = por %p67, %p68
      %p70 = scmp.ne.s32.totalorder %s62, %s64
      %p71 = scmp.eq.s32.totalorder %s26, 1
      %p72 = por %p70, %p71
      %p73 = scmp.ne.s32.totalorder %s64, %s65
      %p74 = scmp.eq.s32.totalorder %s26, 0
      %p75 = por %p73, %p74
      %p76 = scmp.ne.s32.totalorder %s64, %s65
      %p77 = scmp.eq.s32.totalorder %s27, 1
      %p78 = por %p76, %p77
      %p80 = scmp.ne.s32.totalorder %s65, %s79
      %p81 = scmp.eq.s32.totalorder %s27, 0
      %p82 = por %p80, %p81
      %s83 = ssub.s32 %s28, %s40
      %s84 = ssub.s32 %s29, %s36
      %s85 = sor.u32 %s83, %s84
      %p86 = scmp.eq.s32.totalorder %s85, 0
      %s88 = sadd.s32 %s87, 1
      %s89 = scalar_select %p86, %s87, %s88
      %p92 = pneg %p86
      %p93 = scmp.eq.s32.totalorder %s21, 1
      %p94 = por %p92, %p93
      %p95 = scmp.ne.s32.totalorder %s87, %s90
      %p96 = scmp.eq.s32.totalorder %s21, 0
      %p97 = por %p95, %p96
      %p98 = scmp.ne.s32.totalorder %s87, %s90
      %p99 = scmp.eq.s32.totalorder %s26, 1
      %p100 = por %p98, %p99
      %p101 = scmp.ne.s32.totalorder %s90, %s91
      %p102 = scmp.eq.s32.totalorder %s26, 0
      %p103 = por %p101, %p102
      %p104 = scmp.ne.s32.totalorder %s90, %s91
      %p105 = scmp.eq.s32.totalorder %s27, 1
      %p106 = por %p104, %p105
      %p108 = scmp.ne.s32.totalorder %s91, %s107
      %p109 = scmp.eq.s32.totalorder %s27, 0
      %p110 = por %p108, %p109
      %s111 = ssub.s32 %s28, %s40
      %s112 = ssub.s32 %s29, %s36
      %s113 = sor.u32 %s111, %s112
      %p114 = scmp.eq.s32.totalorder %s113, 0
      %s116 = sadd.s32 %s115, 1
      %s117 = scalar_select %p114, %s115, %s116
      %p120 = pneg %p114
      %p121 = scmp.eq.s32.totalorder %s21, 1
      %p122 = por %p120, %p121
      %p123 = scmp.ne.s32.totalorder %s115, %s118
      %p124 = scmp.eq.s32.totalorder %s21, 0
      %p125 = por %p123, %p124
      %p126 = scmp.ne.s32.totalorder %s115, %s118
      %p127 = scmp.eq.s32.totalorder %s26, 1
      %p128 = por %p126, %p127
      %p129 = scmp.ne.s32.totalorder %s118, %s119
      %p130 = scmp.eq.s32.totalorder %s26, 0
      %p131 = por %p129, %p130
      %p132 = scmp.ne.s32.totalorder %s118, %s119
      %p133 = scmp.eq.s32.totalorder %s27, 1
      %p134 = por %p132, %p133
      %p136 = scmp.ne.s32.totalorder %s119, %s135
      %p137 = scmp.eq.s32.totalorder %s27, 0
      %p138 = por %p136, %p137
      %s139 = ssub.s32 %s28, %s40
      %s140 = ssub.s32 %s29, %s36
      %s141 = sor.u32 %s139, %s140
      %p142 = scmp.eq.s32.totalorder %s141, 0
      %s144 = sadd.s32 %s143, 1
      %s145 = scalar_select %p142, %s143, %s144
      %p148 = pneg %p142
      %p149 = scmp.eq.s32.totalorder %s21, 1
      %p150 = por %p148, %p149
      %p151 = scmp.ne.s32.totalorder %s143, %s146
      %p152 = scmp.eq.s32.totalorder %s21, 0
      %p153 = por %p151, %p152
      %p154 = scmp.ne.s32.totalorder %s143, %s146
      %p155 = scmp.eq.s32.totalorder %s26, 1
      %p156 = por %p154, %p155
      %p157 = scmp.ne.s32.totalorder %s146, %s147
      %p158 = scmp.eq.s32.totalorder %s26, 0
      %p159 = por %p157, %p158
      %p160 = scmp.ne.s32.totalorder %s146, %s147
      %p161 = scmp.eq.s32.totalorder %s27, 1
      %p162 = por %p160, %p161
      %p164 = scmp.ne.s32.totalorder %s147, %s163
      %p165 = scmp.eq.s32.totalorder %s27, 0
      %p166 = por %p164, %p165
      %p167 = scmp.le.s32.totalorder 1, %s21
      %p168 = scmp.lt.s32.totalorder %s21, 3
      %p169 = pnand %p167, %p168
      %p170 = pneg %p169
      // Predicated region
      $region9: #{tpu_custom_call.1} parent=5 // pred_check
        _
      $region10: #{tpu_custom_call.1} parent=5 // pred_check_branch
        %172 = sbr.rel (%p169) target = $region12
      $region11: #{tpu_custom_call.1} parent=5 // pred_region
        %s173 = ssub.s32 %s21, 1
        // Predicated region
        $region13: #{tpu_custom_call.1} parent=11 // pred_check
          %p174 = pneg %p54
        $region14: #{tpu_custom_call.1} parent=11 // pred_check_branch
          %176 = sbr.rel (%p174) target = $region16
        $region15: #{tpu_custom_call.1} parent=11 // pred_region
          %178 = vsyncadd [#allocation5], 0
          %s180 = sshll.u32 %s0, 4
          %s181 = int_to_ptr.hbm [resolvable:$true] %s180
          %183 = dma.hbm_to_smem %s181, 16, [#allocation2], [#allocation5]
        $region16: #{tpu_custom_call.1} parent=11 // pred_fallthru
          _
        // Predicated region
        $region17: #{tpu_custom_call.1} parent=11 // pred_check
          %p184 = pneg %p75
        $region18: #{tpu_custom_call.1} parent=11 // pred_check_branch
          %186 = sbr.rel (%p184) target = $region20
        $region19: #{tpu_custom_call.1} parent=11 // pred_region
          %188 = vsyncadd [#allocation7], 0
          %s190 = sshll.u32 %s1, 4
          %s191 = int_to_ptr.hbm [resolvable:$true] %s190
          %193 = dma.hbm_to_smem %s191, 16, [#allocation6], [#allocation7]
        $region20: #{tpu_custom_call.1} parent=11 // pred_fallthru
          _
      $region12: #{tpu_custom_call.1} parent=5 // pred_fallthru
        _
      %p194 = scmp.lt.s32.totalorder %s21, 2
      // Predicated region
      $region21: #{tpu_custom_call.1} parent=5 // pred_check
        %p195 = pneg %p194
      $region22: #{tpu_custom_call.1} parent=5 // pred_check_branch
        %197 = sbr.rel (%p195) target = $region24
      $region23: #{tpu_custom_call.1} parent=5 // pred_region
        // Predicated region
        $region25: #{tpu_custom_call.1} parent=23 // pred_check
          %p198 = pneg %p97
        $region26: #{tpu_custom_call.1} parent=23 // pred_check_branch
          %200 = sbr.rel (%p198) target = $region28
        $region27: #{tpu_custom_call.1} parent=23 // pred_region
          %s201 = sand.u32 %s87, 1
          %s202 = scalar_lea.sflag [#allocation3], %s201
          %s203 = sand.u32 %s87, 1
          %s204 = smul.addr %s203, 24
          %s205 = scalar_lea.vmem [#allocation8], %s204
          %207 = vsyncadd %s202, 0
          %s208 = smul.addr %s28, 3
          %s209 = sadd.s32 %s29, %s208
          %s210 = smul.addr %s209, 8
          %s211 = scalar_lea.hbm %s2, %s210
          %s212 = sshll.u32 %s211, 4
          %s213 = int_to_ptr.hbm [resolvable:$true] %s212
          %s214 = sshll.u32 %s205, 4
          %s215 = int_to_ptr.vmem [resolvable:$true] %s214
          %220 = dma.hbm_to_vmem [thread:$0]  %s213, 384, %s215, %s202, 128, 128, 8
        $region28: #{tpu_custom_call.1} parent=23 // pred_fallthru
          _
        // Predicated region
        $region29: #{tpu_custom_call.1} parent=23 // pred_check
          %p221 = pneg %p125
        $region30: #{tpu_custom_call.1} parent=23 // pred_check_branch
          %223 = sbr.rel (%p221) target = $region32
        $region31: #{tpu_custom_call.1} parent=23 // pred_region
          %s224 = sand.u32 %s115, 1
          %s225 = scalar_lea.sflag [#allocation10], %s224
          %s226 = sand.u32 %s115, 1
          %s227 = smul.addr %s226, 24
          %s228 = scalar_lea.vmem [#allocation9], %s227
          %230 = vsyncadd %s225, 0
          %s231 = smul.addr %s28, 3
          %s232 = sadd.s32 %s29, %s231
          %s233 = smul.addr %s232, 8
          %s234 = scalar_lea.hbm %s3, %s233
          %s235 = sshll.u32 %s234, 4
          %s236 = int_to_ptr.hbm [resolvable:$true] %s235
          %s237 = sshll.u32 %s228, 4
          %s238 = int_to_ptr.vmem [resolvable:$true] %s237
          %243 = dma.hbm_to_vmem [thread:$0]  %s236, 384, %s238, %s225, 128, 128, 8
        $region32: #{tpu_custom_call.1} parent=23 // pred_fallthru
          _
      $region24: #{tpu_custom_call.1} parent=5 // pred_fallthru
        _
      %p244 = scmp.le.s32.totalorder 1, %s21
      %p245 = scmp.lt.s32.totalorder %s21, 3
      %p246 = pnand %p244, %p245
      %p247 = pneg %p246
      // Predicated region
      $region33: #{tpu_custom_call.1} parent=5 // pred_check
        _
      $region34: #{tpu_custom_call.1} parent=5 // pred_check_branch
        %249 = sbr.rel (%p246) target = $region36
      $region35: #{tpu_custom_call.1} parent=5 // pred_region
        %s250 = ssub.s32 %s21, 1
        // Predicated region
        $region37: #{tpu_custom_call.1} parent=35 // pred_check
          %p251 = pneg %p54
        $region38: #{tpu_custom_call.1} parent=35 // pred_check_branch
          %253 = sbr.rel (%p251) target = $region40
        $region39: #{tpu_custom_call.1} parent=35 // pred_region
          %255 = dma.done [#allocation5], 16
        $region40: #{tpu_custom_call.1} parent=35 // pred_fallthru
          _
        // Predicated region
        $region41: #{tpu_custom_call.1} parent=35 // pred_check
          %p256 = pneg %p75
        $region42: #{tpu_custom_call.1} parent=35 // pred_check_branch
          %258 = sbr.rel (%p256) target = $region44
        $region43: #{tpu_custom_call.1} parent=35 // pred_region
          %260 = dma.done [#allocation7], 16
        $region44: #{tpu_custom_call.1} parent=35 // pred_fallthru
          _
        %s261 = sand.u32 %s90, 1
        %s262 = scalar_lea.sflag [#allocation3], %s261
        %s263 = sand.u32 %s90, 1
        %s264 = smul.addr %s263, 24
        %s265 = scalar_lea.vmem [#allocation8], %s264
        // Predicated region
        $region45: #{tpu_custom_call.1} parent=35 // pred_check
          %p266 = pneg %p103
        $region46: #{tpu_custom_call.1} parent=35 // pred_check_branch
          %268 = sbr.rel (%p266) target = $region48
        $region47: #{tpu_custom_call.1} parent=35 // pred_region
          %270 = dma.done %s262, 384
        $region48: #{tpu_custom_call.1} parent=35 // pred_fallthru
          _
        %s271 = sand.u32 %s118, 1
        %s272 = scalar_lea.sflag [#allocation10], %s271
        %s273 = sand.u32 %s118, 1
        %s274 = smul.addr %s273, 24
        %s275 = scalar_lea.vmem [#allocation9], %s274
        // Predicated region
        $region49: #{tpu_custom_call.1} parent=35 // pred_check
          %p276 = pneg %p131
        $region50: #{tpu_custom_call.1} parent=35 // pred_check_branch
          %278 = sbr.rel (%p276) target = $region52
        $region51: #{tpu_custom_call.1} parent=35 // pred_region
          %280 = dma.done %s272, 384
        $region52: #{tpu_custom_call.1} parent=35 // pred_fallthru
          _
        %281 = sfence
        %p282 = pneg %p54
        %p283 = pneg %p51
        %p284 = pneg %p75
        %p285 = pneg %p72
        %s286 = sand.u32 %s90, 1
        %s287 = scalar_lea.sflag [#allocation3], %s286
        %s288 = sand.u32 %s90, 1
        %s289 = smul.addr %s288, 24
        %s290 = scalar_lea.vmem [#allocation8], %s289
        %p291 = pneg %p103
        %p292 = pneg %p100
        %s293 = sand.u32 %s118, 1
        %s294 = scalar_lea.sflag [#allocation10], %s293
        %s295 = sand.u32 %s118, 1
        %s296 = smul.addr %s295, 24
        %s297 = scalar_lea.vmem [#allocation9], %s296
        %p298 = pneg %p131
        %p299 = pneg %p128
        %p300 = pneg %p159
        %p301 = pneg %p156
        %s302 = sand.u32 %s146, 1
        %s303 = scalar_lea.sflag [#allocation4], %s302
        %s304 = sand.u32 %s146, 1
        %s305 = smul.addr %s304, 24
        %s306 = scalar_lea.vmem [#allocation11], %s305
        %s307 = sld [smem:[#allocation2]]
        %s308 = sld [smem:[#allocation2 + $0x1]]
        %s309 = sld [smem:[#allocation2 + $0x2]]
        %s310 = sld [smem:[#allocation2 + $0x3]]
        %s311 = sld [smem:[#allocation2 + $0x4]]
        %s312 = sld [smem:[#allocation2 + $0x5]]
        %s313 = sld [smem:[#allocation2 + $0x6]]
        %s314 = sld [smem:[#allocation2 + $0x7]]
        %s315 = sld [smem:[#allocation2 + $0x8]]
        %s316 = sld [smem:[#allocation2 + $0x9]]
        %s317 = sld [smem:[#allocation2 + $0xa]]
        %s318 = sld [smem:[#allocation2 + $0xb]]
        %s319 = smul.u32 %s30, 3
        %s320 = sld [smem:[#allocation6 + %s319]]
        %s321 = sadd.s32 %s319, 1
        %s322 = sld [smem:[#allocation6 + %s321]]
        %s323 = sadd.s32 %s319, 2
        %s324 = sld [smem:[#allocation6 + %s323]]
        %v325 = vld [vmem:[%s265] sm:$0xff]
        %s326 = scalar_lea.vmem %s265, 8 [#allocation8]
        %v327 = vld [vmem:[%s326] sm:$0xff]
        %s328 = scalar_lea.vmem %s265, 16 [#allocation8]
        %v329 = vld [vmem:[%s328] sm:$0xff]
        %v330 = vld [vmem:[%s275] sm:$0xff]
        %s331 = scalar_lea.vmem %s275, 8 [#allocation9]
        %v332 = vld [vmem:[%s331] sm:$0xff]
        %s333 = scalar_lea.vmem %s275, 16 [#allocation9]
        %v334 = vld [vmem:[%s333] sm:$0xff]
        %v335 = vmul.f32 %v330, %v330
        %v336 = vmul.f32 %v332, %v332
        %v337 = vadd.f32 %v335, %v336
        %v338 = vmul.f32 %v334, %v334
        %v339 = vadd.f32 %v337, %v338
        %v340 = vmax.f32 %v339, 1e-12
        %v341 = vrsqrt.pop %v340
        %v342 = vmul.f32 %v341, %v340
        %v343 = vmul.f32 %v342, %v341
        %v344 = vmul.f32 0.5, %v343
        %v345 = vsub.f32 1.5, %v344
        %v346 = vmul.f32 %v341, %v345
        %vm347 = vweird.f32 %v340
        %vm348 = vweird.f32 %v341
        %vm349 = vmor %vm347, %vm348
        %v350 = vsel %vm349, %v341, %v346
        %v351 = vmul.f32 %v330, %v350
        %v352 = vmul.f32 %v332, %v350
        %v353 = vmul.f32 %v334, %v350
        %v354 = vstv %s307
        %v355 = vsub.f32 %v354, %v325
        %v356 = vstv %s308
        %v357 = vsub.f32 %v356, %v327
        %v358 = vstv %s309
        %v359 = vsub.f32 %v358, %v329
        %v360 = vmul.f32 %v355, %v355
        %v361 = vmul.f32 %v357, %v357
        %v362 = vadd.f32 %v360, %v361
        %v363 = vmul.f32 %v359, %v359
        %v364 = vadd.f32 %v362, %v363
        %v365 = vmax.f32 %v364, 1e-12
        %v366 = vrsqrt.pop %v365
        %v367 = vmul.f32 %v366, %v365
        %v368 = vmul.f32 %v367, %v366
        %v369 = vmul.f32 0.5, %v368
        %v370 = vsub.f32 1.5, %v369
        %v371 = vmul.f32 %v366, %v370
        %vm372 = vweird.f32 %v365
        %vm373 = vweird.f32 %v366
        %vm374 = vmor %vm372, %vm373
        %v375 = vsel %vm374, %v366, %v371
        %v376 = vmul.f32 %v355, %v375
        %v377 = vmul.f32 %v357, %v375
        %v378 = vmul.f32 %v359, %v375
        %v379 = vmul.f32 %v351, %v376
        %v380 = vmul.f32 %v352, %v377
        %v381 = vadd.f32 %v379, %v380
        %v382 = vmul.f32 %v353, %v378
        %v383 = vadd.f32 %v381, %v382
        %v384 = vmax.f32 %v383, 0.0
        %vm385 = vcmp.gt.f32.partialorder %v383, 0.0
        %v386 = vsel %vm385, 1, 0
        %v387 = vcvt.s32.f32 %v386
        %v388 = vstv %s320
        %v389 = vsub.f32 %v388, %v325
        %v390 = vstv %s322
        %v391 = vsub.f32 %v390, %v327
        %v392 = vstv %s324
        %v393 = vsub.f32 %v392, %v329
        %v394 = vmul.f32 %v389, %v389
        %v395 = vmul.f32 %v391, %v391
        %v396 = vadd.f32 %v394, %v395
        %v397 = vmul.f32 %v393, %v393
        %v398 = vadd.f32 %v396, %v397
        %v399 = vmax.f32 %v398, 1e-12
        %v400 = vrsqrt.pop %v399
        %v401 = vmul.f32 %v400, %v399
        %v402 = vmul.f32 %v401, %v400
        %v403 = vmul.f32 0.5, %v402
        %v404 = vsub.f32 1.5, %v403
        %v405 = vmul.f32 %v400, %v404
        %vm406 = vweird.f32 %v399
        %vm407 = vweird.f32 %v400
        %vm408 = vmor %vm406, %vm407
        %v409 = vsel %vm408, %v400, %v405
        %v410 = vmul.f32 %v389, %v409
        %v411 = vmul.f32 %v391, %v409
        %v412 = vmul.f32 %v393, %v409
        %v413 = vmul.f32 %v383, 2.0
        %v414 = vmul.f32 %v413, %v351
        %v415 = vsub.f32 %v414, %v376
        %v416 = vmul.f32 %v413, %v352
        %v417 = vsub.f32 %v416, %v377
        %v418 = vmul.f32 %v413, %v353
        %v419 = vsub.f32 %v418, %v378
        %v420 = vmul.f32 %v410, %v415
        %v421 = vmul.f32 %v411, %v417
        %v422 = vadd.f32 %v420, %v421
        %v423 = vmul.f32 %v412, %v419
        %v424 = vadd.f32 %v422, %v423
        %v425 = vmax.f32 %v424, 0.0
        %v426 = vmul.f32 %v425, %v387
        %v427 = vmul.f32 %v426, %v426
        %v428 = vmul.f32 %v427, %v427
        %v429 = vmul.f32 %v428, %v428
        %v430 = vmul.f32 %v429, %v429
        %v431 = vmul.f32 %v430, %v430
        %v432 = vmul.f32 %v431, %v431
        %v433 = vstv %s313
        %v434 = vmul.f32 %v433, %v384
        %v435 = vstv %s310
        %v436 = vadd.f32 %v435, %v434
        %v437 = vstv %s316
        %v438 = vmul.f32 %v437, %v432
        %v439 = vadd.f32 %v436, %v438
        %440 = vst [vmem:[%s306] sm:$0xff] %v439
        %v441 = vstv %s314
        %v442 = vmul.f32 %v441, %v384
        %v443 = vstv %s311
        %v444 = vadd.f32 %v443, %v442
        %v445 = vstv %s317
        %v446 = vmul.f32 %v445, %v432
        %v447 = vadd.f32 %v444, %v446
        %s448 = scalar_lea.vmem %s306, 8 [#allocation11]
        %449 = vst [vmem:[%s448] sm:$0xff] %v447
        %v450 = vstv %s315
        %v451 = vmul.f32 %v450, %v384
        %v452 = vstv %s312
        %v453 = vadd.f32 %v452, %v451
        %v454 = vstv %s318
        %v455 = vmul.f32 %v454, %v432
        %v456 = vadd.f32 %v453, %v455
        %s457 = scalar_lea.vmem %s306, 16 [#allocation11]
        %458 = vst [vmem:[%s457] sm:$0xff] %v456
        %s459 = sand.u32 %s146, 1
        %s460 = scalar_lea.sflag [#allocation4], %s459
        %s461 = sand.u32 %s146, 1
        %s462 = smul.addr %s461, 24
        %s463 = scalar_lea.vmem [#allocation11], %s462
        // Predicated region
        $region53: #{tpu_custom_call.1} parent=35 // pred_check
          %p464 = pneg %p156
        $region54: #{tpu_custom_call.1} parent=35 // pred_check_branch
          %466 = sbr.rel (%p464) target = $region56
        $region55: #{tpu_custom_call.1} parent=35 // pred_region
          %468 = vsyncadd %s460, 0
          %s469 = smul.addr %s30, 3
          %s470 = sadd.s32 %s31, %s469
          %s471 = smul.addr %s470, 8
          %s472 = scalar_lea.hbm %s4, %s471
          %s473 = sshll.u32 %s463, 4
          %s474 = int_to_ptr.vmem [resolvable:$true] %s473
          %s475 = sshll.u32 %s472, 4
          %s476 = int_to_ptr.hbm [resolvable:$true] %s475
          %481 = dma.vmem_to_hbm [thread:$0]  %s474, 384, %s476, %s460, 128, 128, 8
        $region56: #{tpu_custom_call.1} parent=35 // pred_fallthru
          _
      $region36: #{tpu_custom_call.1} parent=5 // pred_fallthru
        _
      %p482 = scmp.le.s32.totalorder 2, %s21
      // Predicated region
      $region57: #{tpu_custom_call.1} parent=5 // pred_check
        %p483 = pneg %p482
      $region58: #{tpu_custom_call.1} parent=5 // pred_check_branch
        %485 = sbr.rel (%p483) target = $region60
      $region59: #{tpu_custom_call.1} parent=5 // pred_region
        %s486 = ssub.s32 %s21, 2
        // Predicated region
        $region61: #{tpu_custom_call.1} parent=59 // pred_check
          %p487 = pneg %p162
        $region62: #{tpu_custom_call.1} parent=59 // pred_check_branch
          %489 = sbr.rel (%p487) target = $region64
        $region63: #{tpu_custom_call.1} parent=59 // pred_region
          %s490 = sand.u32 %s147, 1
          %s491 = scalar_lea.sflag [#allocation4], %s490
          %s492 = sand.u32 %s147, 1
          %s493 = smul.addr %s492, 24
          %s494 = scalar_lea.vmem [#allocation11], %s493
          %496 = dma.done %s491, 384
        $region64: #{tpu_custom_call.1} parent=59 // pred_fallthru
          _
      $region60: #{tpu_custom_call.1} parent=5 // pred_fallthru
        _
    $region6: #{tpu_custom_call.1} parent=1 // loop_footer
      %s25 = sadd.s32 1, %s21
    $region7: #{tpu_custom_call.1} parent=1 // loop_footer_branch
      %20 = sbr.rel target = $region3
    $region8: #{tpu_custom_call.1} parent=1 // loop_exit
      _
    %497 = vsyncpa [#allocation3], 1
    %s498 = scalar_lea.sflag [#allocation3], 1
    %499 = vsyncpa %s498, 1
    %500 = vsyncpa [#allocation10], 1
    %s501 = scalar_lea.sflag [#allocation10], 1
    %502 = vsyncpa %s501, 1
    %503 = vsyncpa [#allocation4], 1
    %s504 = scalar_lea.sflag [#allocation4], 1
    %505 = vsyncpa %s504, 1
    %506 = vsyncpa [#allocation5], 1
    %s507 = scalar_lea.sflag [#allocation5], 1
    %508 = vsyncpa %s507, 1
    %509 = vsyncpa [#allocation7], 1

</llo_original>
